<compile_context>
chip_gen: v6e
topology: v6e:2x2x1
jax: 0.10.0
libtpu: 0.0.40
codegen_flags: <defaults>
</compile_context>

<pallas_src>
import jax
import jax.numpy as jnp
from jax.experimental import pallas as pl
from jax.experimental.pallas import tpu as pltpu


EMBED_DIM = 128          # embedding_dim from the module
H1, H2 = 64, 32          # fc1 / fc2 output widths (fc3 -> 1)
TB = 2048                # max batch tile (rows / sublanes)


def _round_up(x: int, m: int) -> int:
    return ((x + m - 1) // m) * m


def _make_kernel(tb: int, E: int, B: int):
    """Builds the fused gather + MLP kernel for static (tb, E, B)."""

    def kernel(u_idx_ref, i_idx_ref,          # scalar prefetch: int32[B] in SMEM
               uemb_hbm, iemb_hbm,            # f32 [Nu, E] / [Ni, E] in HBM (pl.ANY)
               w1_ref, b1_ref, w2_ref, b2_ref, w3_ref, b3_ref,  # VMEM weights
               o_ref,                          # (tb, 1) f32 output block
               slab, sem):                     # scratch: VMEM (tb, 2E) f32, DMA sem (1,)
        base = pl.program_id(0) * tb

        # ---- fused embedding gather: one contiguous row DMA per table row ----
        @pl.loop(0, tb)
        def _issue(j):
            jg = jnp.minimum(base + j, B - 1)        # clamp ragged tail (no wrapper pad)
            u = u_idx_ref[jg]
            it = i_idx_ref[jg]
            pltpu.make_async_copy(uemb_hbm.at[u],
                                  slab.at[j, pl.ds(0, E)], sem.at[0]).start()
            pltpu.make_async_copy(iemb_hbm.at[it],
                                  slab.at[j, pl.ds(E, E)], sem.at[0]).start()

        @pl.loop(0, tb)
        def _wait(j):
            jg = jnp.minimum(base + j, B - 1)
            u = u_idx_ref[jg]
            it = i_idx_ref[jg]
            pltpu.make_async_copy(uemb_hbm.at[u],
                                  slab.at[j, pl.ds(0, E)], sem.at[0]).wait()
            pltpu.make_async_copy(iemb_hbm.at[it],
                                  slab.at[j, pl.ds(E, E)], sem.at[0]).wait()

        # ---- MLP: batch on sublanes, bf16 MXU operands, f32 accumulation ----
        x = slab[...].astype(jnp.bfloat16)                                # (tb, 2E)
        h1 = jnp.dot(x, w1_ref[...], preferred_element_type=jnp.float32)  # K=256 dot
        h1 = jnp.maximum(h1 + b1_ref[...], 0.0)                           # (tb, H1)
        h2 = jnp.dot(h1.astype(jnp.bfloat16), w2_ref[...],
                     preferred_element_type=jnp.float32)
        h2 = jnp.maximum(h2 + b2_ref[...], 0.0)                           # (tb, H2)

        # fc3 (32 -> 1): VPU multiply + lane reduce, no Nx1 MXU matmul.
        z = jnp.sum(h2 * w3_ref[...], axis=1, keepdims=True) + b3_ref[...]  # (tb, 1)

        sig = 1.0 / (1.0 + jnp.exp(-z))            # exact divide (no approx recip)
        o_ref[...] = jnp.clip(sig * 4.0 + 1.0, 1.0, 5.0)

    return kernel


def mlp_forward(user_idx, item_idx, user_emb, item_emb,
                w1, b1, w2, b2, w3_row, b3, *, tb=None):
    """user_idx/item_idx: int32[B]; user_emb/item_emb: f32 [N, E] (row-major);
    w1: bf16 (2E, H1); w2: bf16 (H1, H2); biases / w3_row f32.
    Returns f32 [B, 1] in [1, 5]."""
    B = int(user_idx.shape[0])
    _, E = user_emb.shape
    assert item_emb.shape[1] == E

    if tb is None:
        # >= 2 grid steps when the batch allows it (v7x megacore), capped at TB.
        tb = min(TB, max(128, _round_up(-(-B // 2), 128)))
    grid_n = pl.cdiv(B, tb)

    kernel = _make_kernel(tb, E, B)
    inv = lambda i, *_: (0, 0)      # weights: whole array, VMEM-resident all steps

    out = pl.pallas_call(
        kernel,
        out_shape=jax.ShapeDtypeStruct((grid_n * tb, 1), jnp.float32),
        grid_spec=pltpu.PrefetchScalarGridSpec(
            num_scalar_prefetch=2,                    # user_idx, item_idx -> SMEM
            grid=(grid_n,),
            in_specs=[
                pl.BlockSpec(memory_space=pl.ANY),    # user table [Nu, E] (HBM)
                pl.BlockSpec(memory_space=pl.ANY),    # item table [Ni, E] (HBM)
                pl.BlockSpec((2 * E, H1), inv),       # w1 (bf16)
                pl.BlockSpec((1, H1), inv),           # b1
                pl.BlockSpec((H1, H2), inv),          # w2 (bf16)
                pl.BlockSpec((1, H2), inv),           # b2
                pl.BlockSpec((1, H2), inv),           # w3 (row)
                pl.BlockSpec((1, 1), inv),            # b3
            ],
            out_specs=pl.BlockSpec((tb, 1), lambda i, *_: (i, 0)),
            scratch_shapes=[
                pltpu.VMEM((tb, 2 * E), jnp.float32),  # gathered activation slab
                pltpu.SemaphoreType.DMA((1,)),         # shared gather semaphore
            ],
        ),
        compiler_params=pltpu.CompilerParams(
            dimension_semantics=("parallel",),
        ),
    )(user_idx, item_idx, user_emb, item_emb, w1, b1, w2, b2, w3_row, b3)

    return out[:B]


def init_params(key, num_users, num_items, embedding_dim=EMBED_DIM):
    """PyTorch-equivalent init. Embeddings row-major [N, E]; linear weights are
    stored transposed (in, out) so `x @ w` == torch's `x @ W.T`."""
    ks = jax.random.split(key, 8)

    def uniform(k, shape, bound):
        return jax.random.uniform(k, shape, jnp.float32, -bound, bound)

    fan1 = 2 * embedding_dim
    return {
        "user_emb": jax.random.normal(ks[0], (num_users, embedding_dim), jnp.float32),
        "item_emb": jax.random.normal(ks[1], (num_items, embedding_dim), jnp.float32),
        "w1": uniform(ks[2], (fan1, H1), fan1 ** -0.5),
        "b1": uniform(ks[3], (1, H1), fan1 ** -0.5),
        "w2": uniform(ks[4], (H1, H2), H1 ** -0.5),
        "b2": uniform(ks[5], (1, H2), H1 ** -0.5),
        "w3_row": uniform(ks[6], (1, H2), H2 ** -0.5),
        "b3": uniform(ks[7], (1, 1), H2 ** -0.5),
    }


def net_forward(params, x):
    """x: [B, 2] int (user_idx, item_idx). Returns [B, 1] f32 in [1, 5]."""
    user_idx = x[:, 0].astype(jnp.int32)
    item_idx = x[:, 1].astype(jnp.int32)
    return mlp_forward(
        user_idx, item_idx,
        params["user_emb"], params["item_emb"],
        params["w1"].astype(jnp.bfloat16), params["b1"],
        params["w2"].astype(jnp.bfloat16), params["b2"],
        params["w3_row"], params["b3"],
    )


def net_forward_ref(params, x):
    """Pure-JAX f32 reference (mirrors the PyTorch module exactly)."""
    u = params["user_emb"][x[:, 0]]                 # [B, E]
    it = params["item_emb"][x[:, 1]]                # [B, E]
    h = jnp.concatenate([u, it], axis=1)            # [B, 2E]
    h = jax.nn.relu(h @ params["w1"] + params["b1"])
    h = jax.nn.relu(h @ params["w2"] + params["b2"])
    z = jnp.sum(h * params["w3_row"], axis=1, keepdims=True) + params["b3"]
    return jax.nn.sigmoid(z) * 4.0 + 1.0


if __name__ == "__main__":
    key = jax.random.PRNGKey(0)
    num_users, num_items = 16, 24
    params = init_params(key, num_users, num_items)

    fwd = jax.jit(net_forward)

    # batch=8: single tile; batch=200: 2 grid steps + ragged tail (clamped rows).
    for batch in (8, 200):
        kb = jax.random.fold_in(jax.random.PRNGKey(0), batch)
        k_u, k_i = jax.random.split(kb, 2)
        user_idx = jax.random.randint(k_u, (batch,), 0, num_users, jnp.int32)
        item_idx = jax.random.randint(k_i, (batch,), 0, num_items, jnp.int32)
        x = jnp.stack([user_idx, item_idx], axis=1)           # [B, 2] int32

        out = jax.block_until_ready(fwd(params, x))
        ref = net_forward_ref(params, x)

        assert out.shape == (batch, 1)
        assert bool(jnp.all(jnp.isfinite(out)))
        assert bool(jnp.all((out >= 1.0) & (out <= 5.0)))
        # bf16 matmul operands vs f32 reference -> relaxed tolerance
        err = float(jnp.max(jnp.abs(out - ref)))
        assert err < 5e-2, err

    print("KERNEL_OK")
</pallas_src>

<mosaic_0001>
module attributes {stable_mosaic.version = 11 : i64} {
  func.func @kernel(%arg0: i32, %arg1: memref<8xi32, #tpu.memory_space<smem>>, %arg2: memref<8xi32, #tpu.memory_space<smem>>, %arg3: memref<16x128xf32, #tpu.memory_space<any>>, %arg4: memref<24x128xf32, #tpu.memory_space<any>>, %arg5: memref<256x64xbf16, #tpu.memory_space<vmem>>, %arg6: memref<1x64xf32, #tpu.memory_space<vmem>>, %arg7: memref<64x32xbf16, #tpu.memory_space<vmem>>, %arg8: memref<1x32xf32, #tpu.memory_space<vmem>>, %arg9: memref<1x32xf32, #tpu.memory_space<vmem>>, %arg10: memref<1x1xf32, #tpu.memory_space<vmem>>, %arg11: memref<128x1xf32, #tpu.memory_space<vmem>>, %arg12: memref<128x256xf32, #tpu.memory_space<vmem>>, %arg13: memref<1x!tpu.dma_semaphore, #tpu.memory_space<semaphore_mem>>) attributes {dimension_semantics = [#tpu.dimension_semantics<parallel>], iteration_bounds = array<i64: 1>, scalar_prefetch = 2 : i64, scratch_operands = 2 : i64, tpu.core_type = #tpu.core_type<tc>, window_params = [{}, {}, {pipeline_mode = #tpu.pipeline_mode<synchronous>, transform_indices = @transform_2, window_bounds = array<i64: 256, 64>}, {pipeline_mode = #tpu.pipeline_mode<synchronous>, transform_indices = @transform_3, window_bounds = array<i64: 1, 64>}, {pipeline_mode = #tpu.pipeline_mode<synchronous>, transform_indices = @transform_4, window_bounds = array<i64: 64, 32>}, {pipeline_mode = #tpu.pipeline_mode<synchronous>, transform_indices = @transform_5, window_bounds = array<i64: 1, 32>}, {pipeline_mode = #tpu.pipeline_mode<synchronous>, transform_indices = @transform_6, window_bounds = array<i64: 1, 32>}, {pipeline_mode = #tpu.pipeline_mode<synchronous>, transform_indices = @transform_7, window_bounds = array<i64: 1, 1>}, {transform_indices = @transform_8, window_bounds = array<i64: 128, 1>}]} {
    %c128_i32 = arith.constant 128 : i32
    %0 = arith.muli %arg0, %c128_i32 : i32
    %c0_i32 = arith.constant 0 : i32
    %c128_i32_0 = arith.constant 128 : i32
    %1 = arith.addi %c0_i32, %c128_i32_0 : i32
    %c1_i32 = arith.constant 1 : i32
    scf.for %arg14 = %c0_i32 to %1 step %c1_i32  : i32 {
      %c1_i32_32 = arith.constant 1 : i32
      %44 = arith.muli %arg14, %c1_i32_32 : i32
      %c0_i32_33 = arith.constant 0 : i32
      %45 = arith.addi %c0_i32_33, %44 : i32
      %46 = arith.addi %0, %45 : i32
      %c7_i32 = arith.constant 7 : i32
      %47 = arith.minsi %46, %c7_i32 : i32
      %48 = arith.index_cast %47 : i32 to index
      %49 = memref.load %arg1[%48] : memref<8xi32, #tpu.memory_space<smem>>
      %50 = arith.index_cast %47 : i32 to index
      %51 = memref.load %arg2[%50] : memref<8xi32, #tpu.memory_space<smem>>
      %c0_i32_34 = arith.constant 0 : i32
      %c0_i32_35 = arith.constant 0 : i32
      %52 = tpu.memref_slice %arg3[%49, %c0_i32_35] : memref<16x128xf32, #tpu.memory_space<any>> -> memref<1x128xf32, #tpu.memory_space<any>>
      %53 = tpu.memref_squeeze %52 : memref<1x128xf32, #tpu.memory_space<any>> -> memref<128xf32, #tpu.memory_space<any>>
      %c0_i32_36 = arith.constant 0 : i32
      %54 = tpu.memref_slice %arg12[%45, %c0_i32_36] : memref<128x256xf32, #tpu.memory_space<vmem>> -> memref<1x128xf32, #tpu.memory_space<vmem>>
      %55 = tpu.memref_squeeze %54 : memref<1x128xf32, #tpu.memory_space<vmem>> -> memref<128xf32, #tpu.memory_space<vmem>>
      %56 = tpu.memref_slice %arg13[%c0_i32_34] : memref<1x!tpu.dma_semaphore, #tpu.memory_space<semaphore_mem>> -> memref<1x!tpu.dma_semaphore, #tpu.memory_space<semaphore_mem>>
      %57 = tpu.memref_squeeze %56 : memref<1x!tpu.dma_semaphore, #tpu.memory_space<semaphore_mem>> -> memref<!tpu.dma_semaphore, #tpu.memory_space<semaphore_mem>>
      tpu.enqueue_dma source(%53 : memref<128xf32, #tpu.memory_space<any>>) target(%55 : memref<128xf32, #tpu.memory_space<vmem>>) target_semaphore(%57 : memref<!tpu.dma_semaphore, #tpu.memory_space<semaphore_mem>>)
      %c0_i32_37 = arith.constant 0 : i32
      %c0_i32_38 = arith.constant 0 : i32
      %58 = tpu.memref_slice %arg4[%51, %c0_i32_38] : memref<24x128xf32, #tpu.memory_space<any>> -> memref<1x128xf32, #tpu.memory_space<any>>
      %59 = tpu.memref_squeeze %58 : memref<1x128xf32, #tpu.memory_space<any>> -> memref<128xf32, #tpu.memory_space<any>>
      %c128_i32_39 = arith.constant 128 : i32
      %60 = tpu.memref_slice %arg12[%45, %c128_i32_39] : memref<128x256xf32, #tpu.memory_space<vmem>> -> memref<1x128xf32, #tpu.memory_space<vmem>>
      %61 = tpu.memref_squeeze %60 : memref<1x128xf32, #tpu.memory_space<vmem>> -> memref<128xf32, #tpu.memory_space<vmem>>
      %62 = tpu.memref_slice %arg13[%c0_i32_37] : memref<1x!tpu.dma_semaphore, #tpu.memory_space<semaphore_mem>> -> memref<1x!tpu.dma_semaphore, #tpu.memory_space<semaphore_mem>>
      %63 = tpu.memref_squeeze %62 : memref<1x!tpu.dma_semaphore, #tpu.memory_space<semaphore_mem>> -> memref<!tpu.dma_semaphore, #tpu.memory_space<semaphore_mem>>
      tpu.enqueue_dma source(%59 : memref<128xf32, #tpu.memory_space<any>>) target(%61 : memref<128xf32, #tpu.memory_space<vmem>>) target_semaphore(%63 : memref<!tpu.dma_semaphore, #tpu.memory_space<semaphore_mem>>)
    }
    %c128_i32_1 = arith.constant 128 : i32
    %c0_i32_2 = arith.constant 0 : i32
    %c128_i32_3 = arith.constant 128 : i32
    %2 = arith.addi %c0_i32_2, %c128_i32_3 : i32
    %c1_i32_4 = arith.constant 1 : i32
    scf.for %arg14 = %c0_i32_2 to %2 step %c1_i32_4  : i32 {
      %c1_i32_32 = arith.constant 1 : i32
      %44 = arith.muli %arg14, %c1_i32_32 : i32
      %c0_i32_33 = arith.constant 0 : i32
      %45 = arith.addi %c0_i32_33, %44 : i32
      %46 = arith.addi %0, %45 : i32
      %c7_i32 = arith.constant 7 : i32
      %47 = arith.minsi %46, %c7_i32 : i32
      %48 = arith.index_cast %47 : i32 to index
      %49 = memref.load %arg1[%48] : memref<8xi32, #tpu.memory_space<smem>>
      %50 = arith.index_cast %47 : i32 to index
      %51 = memref.load %arg2[%50] : memref<8xi32, #tpu.memory_space<smem>>
      %c0_i32_34 = arith.constant 0 : i32
      %c0_i32_35 = arith.constant 0 : i32
      %52 = tpu.memref_slice %arg3[%49, %c0_i32_35] : memref<16x128xf32, #tpu.memory_space<any>> -> memref<1x128xf32, #tpu.memory_space<any>>
      %53 = tpu.memref_squeeze %52 : memref<1x128xf32, #tpu.memory_space<any>> -> memref<128xf32, #tpu.memory_space<any>>
      %c0_i32_36 = arith.constant 0 : i32
      %54 = tpu.memref_slice %arg12[%45, %c0_i32_36] : memref<128x256xf32, #tpu.memory_space<vmem>> -> memref<1x128xf32, #tpu.memory_space<vmem>>
      %55 = tpu.memref_squeeze %54 : memref<1x128xf32, #tpu.memory_space<vmem>> -> memref<128xf32, #tpu.memory_space<vmem>>
      %56 = tpu.memref_slice %arg13[%c0_i32_34] : memref<1x!tpu.dma_semaphore, #tpu.memory_space<semaphore_mem>> -> memref<1x!tpu.dma_semaphore, #tpu.memory_space<semaphore_mem>>
      %57 = tpu.memref_squeeze %56 : memref<1x!tpu.dma_semaphore, #tpu.memory_space<semaphore_mem>> -> memref<!tpu.dma_semaphore, #tpu.memory_space<semaphore_mem>>
      tpu.wait_dma2 semaphore(%57 : memref<!tpu.dma_semaphore, #tpu.memory_space<semaphore_mem>>) src(%53 : memref<128xf32, #tpu.memory_space<any>>) dst(%55 : memref<128xf32, #tpu.memory_space<vmem>>)
      %c0_i32_37 = arith.constant 0 : i32
      %c0_i32_38 = arith.constant 0 : i32
      %58 = tpu.memref_slice %arg4[%51, %c0_i32_38] : memref<24x128xf32, #tpu.memory_space<any>> -> memref<1x128xf32, #tpu.memory_space<any>>
      %59 = tpu.memref_squeeze %58 : memref<1x128xf32, #tpu.memory_space<any>> -> memref<128xf32, #tpu.memory_space<any>>
      %c128_i32_39 = arith.constant 128 : i32
      %60 = tpu.memref_slice %arg12[%45, %c128_i32_39] : memref<128x256xf32, #tpu.memory_space<vmem>> -> memref<1x128xf32, #tpu.memory_space<vmem>>
      %61 = tpu.memref_squeeze %60 : memref<1x128xf32, #tpu.memory_space<vmem>> -> memref<128xf32, #tpu.memory_space<vmem>>
      %62 = tpu.memref_slice %arg13[%c0_i32_37] : memref<1x!tpu.dma_semaphore, #tpu.memory_space<semaphore_mem>> -> memref<1x!tpu.dma_semaphore, #tpu.memory_space<semaphore_mem>>
      %63 = tpu.memref_squeeze %62 : memref<1x!tpu.dma_semaphore, #tpu.memory_space<semaphore_mem>> -> memref<!tpu.dma_semaphore, #tpu.memory_space<semaphore_mem>>
      tpu.wait_dma2 semaphore(%63 : memref<!tpu.dma_semaphore, #tpu.memory_space<semaphore_mem>>) src(%59 : memref<128xf32, #tpu.memory_space<any>>) dst(%61 : memref<128xf32, #tpu.memory_space<vmem>>)
    }
    %c128_i32_5 = arith.constant 128 : i32
    %c0 = arith.constant 0 : index
    %c0_6 = arith.constant 0 : index
    %3 = vector.load %arg12[%c0, %c0_6] : memref<128x256xf32, #tpu.memory_space<vmem>>, vector<128x256xf32>
    %4 = arith.truncf %3 : vector<128x256xf32> to vector<128x256xbf16>
    %c0_7 = arith.constant 0 : index
    %c0_8 = arith.constant 0 : index
    %5 = vector.load %arg5[%c0_7, %c0_8] : memref<256x64xbf16, #tpu.memory_space<vmem>>, vector<256x64xbf16>
    %cst = arith.constant dense<0.000000e+00> : vector<128x64xf32>
    %6 = tpu.matmul %4, %5, %cst {dimension_numbers = #tpu.dot_dimension_numbers<[1], [0], [0], [1], [0, 0, 1, 1], [], []>} : vector<128x256xbf16>, vector<256x64xbf16>, vector<128x64xf32> -> vector<128x64xf32>
    %c0_9 = arith.constant 0 : index
    %c0_10 = arith.constant 0 : index
    %7 = vector.load %arg6[%c0_9, %c0_10] : memref<1x64xf32, #tpu.memory_space<vmem>>, vector<1x64xf32>
    %8 = vector.broadcast %7 : vector<1x64xf32> to vector<128x64xf32>
    %9 = arith.addf %6, %8 : vector<128x64xf32>
    %cst_11 = arith.constant 0.000000e+00 : f32
    %10 = vector.broadcast %cst_11 : f32 to vector<128x64xf32>
    %11 = arith.maximumf %9, %10 : vector<128x64xf32>
    %12 = arith.truncf %11 : vector<128x64xf32> to vector<128x64xbf16>
    %c0_12 = arith.constant 0 : index
    %c0_13 = arith.constant 0 : index
    %13 = vector.load %arg7[%c0_12, %c0_13] : memref<64x32xbf16, #tpu.memory_space<vmem>>, vector<64x32xbf16>
    %cst_14 = arith.constant dense<0.000000e+00> : vector<128x32xf32>
    %14 = tpu.matmul %12, %13, %cst_14 {dimension_numbers = #tpu.dot_dimension_numbers<[1], [0], [0], [1], [0, 0, 1, 1], [], []>} : vector<128x64xbf16>, vector<64x32xbf16>, vector<128x32xf32> -> vector<128x32xf32>
    %c0_15 = arith.constant 0 : index
    %c0_16 = arith.constant 0 : index
    %15 = vector.load %arg8[%c0_15, %c0_16] : memref<1x32xf32, #tpu.memory_space<vmem>>, vector<1x32xf32>
    %16 = vector.broadcast %15 : vector<1x32xf32> to vector<128x32xf32>
    %17 = arith.addf %14, %16 : vector<128x32xf32>
    %cst_17 = arith.constant 0.000000e+00 : f32
    %18 = vector.broadcast %cst_17 : f32 to vector<128x32xf32>
    %19 = arith.maximumf %17, %18 : vector<128x32xf32>
    %c0_18 = arith.constant 0 : index
    %c0_19 = arith.constant 0 : index
    %20 = vector.load %arg9[%c0_18, %c0_19] : memref<1x32xf32, #tpu.memory_space<vmem>>, vector<1x32xf32>
    %21 = vector.broadcast %20 : vector<1x32xf32> to vector<128x32xf32>
    %22 = arith.mulf %19, %21 : vector<128x32xf32>
    %cst_20 = arith.constant dense<0.000000e+00> : vector<128xf32>
    %23 = vector.multi_reduction <add>, %22, %cst_20 [1] : vector<128x32xf32> to vector<128xf32>
    %24 = vector.shape_cast %23 : vector<128xf32> to vector<128x1xf32>
    %c0_21 = arith.constant 0 : index
    %c0_22 = arith.constant 0 : index
    %25 = vector.load %arg10[%c0_21, %c0_22] : memref<1x1xf32, #tpu.memory_space<vmem>>, vector<1x1xf32>
    %26 = vector.broadcast %25 : vector<1x1xf32> to vector<128x1xf32>
    %27 = arith.addf %24, %26 : vector<128x1xf32>
    %cst_23 = arith.constant 0.000000e+00 : f32
    %28 = vector.broadcast %cst_23 : f32 to vector<128x1xf32>
    %29 = arith.subf %28, %27 : vector<128x1xf32>
    %30 = math.exp %29 : vector<128x1xf32>
    %cst_24 = arith.constant 1.000000e+00 : f32
    %31 = vector.broadcast %cst_24 : f32 to vector<128x1xf32>
    %32 = arith.addf %31, %30 : vector<128x1xf32>
    %cst_25 = arith.constant 1.000000e+00 : f32
    %33 = vector.broadcast %cst_25 : f32 to vector<128x1xf32>
    %34 = arith.divf %33, %32 : vector<128x1xf32>
    %cst_26 = arith.constant 4.000000e+00 : f32
    %35 = vector.broadcast %cst_26 : f32 to vector<128x1xf32>
    %36 = arith.mulf %34, %35 : vector<128x1xf32>
    %cst_27 = arith.constant 1.000000e+00 : f32
    %37 = vector.broadcast %cst_27 : f32 to vector<128x1xf32>
    %38 = arith.addf %36, %37 : vector<128x1xf32>
    %cst_28 = arith.constant 1.000000e+00 : f32
    %cst_29 = arith.constant 5.000000e+00 : f32
    %39 = vector.broadcast %cst_28 : f32 to vector<128x1xf32>
    %40 = arith.maximumf %39, %38 : vector<128x1xf32>
    %41 = vector.broadcast %cst_29 : f32 to vector<128x1xf32>
    %42 = arith.minimumf %41, %40 : vector<128x1xf32>
    %c0_30 = arith.constant 0 : index
    %c0_31 = arith.constant 0 : index
    %43 = vector.load %arg11[%c0_30, %c0_31] : memref<128x1xf32, #tpu.memory_space<vmem>>, vector<128x1xf32>
    tpu.vector_store %arg11[%c0_30, %c0_31], %42 {strides = array<i32>} : memref<128x1xf32, #tpu.memory_space<vmem>>, vector<128x1xf32>,
    return
  }
  func.func @transform_2(%arg0: i32, %arg1: memref<8xi32, #tpu.memory_space<smem>>, %arg2: memref<8xi32, #tpu.memory_space<smem>>) -> (i32, i32) {
    %c0_i32 = arith.constant 0 : i32
    %c0_i32_0 = arith.constant 0 : i32
    %c0_i32_1 = arith.constant 0 : i32
    return %c0_i32, %c0_i32_0 : i32, i32
  }
  func.func @transform_3(%arg0: i32, %arg1: memref<8xi32, #tpu.memory_space<smem>>, %arg2: memref<8xi32, #tpu.memory_space<smem>>) -> (i32, i32) {
    %c0_i32 = arith.constant 0 : i32
    %c0_i32_0 = arith.constant 0 : i32
    %c0_i32_1 = arith.constant 0 : i32
    return %c0_i32, %c0_i32_0 : i32, i32
  }
  func.func @transform_4(%arg0: i32, %arg1: memref<8xi32, #tpu.memory_space<smem>>, %arg2: memref<8xi32, #tpu.memory_space<smem>>) -> (i32, i32) {
    %c0_i32 = arith.constant 0 : i32
    %c0_i32_0 = arith.constant 0 : i32
    %c0_i32_1 = arith.constant 0 : i32
    return %c0_i32, %c0_i32_0 : i32, i32
  }
  func.func @transform_5(%arg0: i32, %arg1: memref<8xi32, #tpu.memory_space<smem>>, %arg2: memref<8xi32, #tpu.memory_space<smem>>) -> (i32, i32) {
    %c0_i32 = arith.constant 0 : i32
    %c0_i32_0 = arith.constant 0 : i32
    %c0_i32_1 = arith.constant 0 : i32
    return %c0_i32, %c0_i32_0 : i32, i32
  }
  func.func @transform_6(%arg0: i32, %arg1: memref<8xi32, #tpu.memory_space<smem>>, %arg2: memref<8xi32, #tpu.memory_space<smem>>) -> (i32, i32) {
    %c0_i32 = arith.constant 0 : i32
    %c0_i32_0 = arith.constant 0 : i32
    %c0_i32_1 = arith.constant 0 : i32
    return %c0_i32, %c0_i32_0 : i32, i32
  }
  func.func @transform_7(%arg0: i32, %arg1: memref<8xi32, #tpu.memory_space<smem>>, %arg2: memref<8xi32, #tpu.memory_space<smem>>) -> (i32, i32) {
    %c0_i32 = arith.constant 0 : i32
    %c0_i32_0 = arith.constant 0 : i32
    %c0_i32_1 = arith.constant 0 : i32
    return %c0_i32, %c0_i32_0 : i32, i32
  }
  func.func @transform_8(%arg0: i32, %arg1: memref<8xi32, #tpu.memory_space<smem>>, %arg2: memref<8xi32, #tpu.memory_space<smem>>) -> (i32, i32) {
    %c0_i32 = arith.constant 0 : i32
    %c0_i32_0 = arith.constant 0 : i32
    return %arg0, %c0_i32 : i32, i32
  }
}

</mosaic_0001>

<llo_original>
// kernel: net_forward.1
$region0: #{net_forward.1}
  #allocation0 [shape = 'u32[]', space=smem, size = 0x4, offset = 0x4, fixed_abs, tag = 'smem constant byte address 0x4 - core index']
  #allocation1 [shape = 'u32[144,128]{1,0:T(1,128)}', space=vmem, size = 0x12000, scoped, tag = 'internal scratch']
  #allocation2 [shape = 'f32[128,256]{1,0:T(8,128)}', space=vmem, size = 0x20000, scoped, tag = 'scratch operand']
  #allocation3 [shape = 's32[1]{0}', space=sflag, size = 0x4, scoped, tag = 'scratch operand']
  #allocation4 [shape = 's32[1]{0}', space=sflag, size = 0x4, scoped, tag = 'scoped memory for net_forward.1']
  #allocation5 [shape = 'u8[512]{0}', space=smem, size = 0x200, scoped, tag = 'prefetched SMEM operand 0']
  #allocation6 [shape = 'u8[512]{0}', space=smem, size = 0x200, scoped, tag = 'prefetched SMEM operand 1']
  #allocation7 [shape = 'f32[1,1]{1,0:T(1,128)S(1)}', space=vmem, size = 0x200, scoped, tag = 'scoped memory for net_forward.1']
  #allocation8 [shape = 's32[]', space=sflag, size = 0x4, offset = 0, fixed_abs, tag = 'sflag constant byte address 0x0 - dummy sync flag']
  #allocation9 [shape = 's32[]', space=sflag, size = 0x4, offset = 0, fixed_abs, tag = 'sflag constant byte address 0x0 - dummy sync flag']
  %s0 = inlined_call_operand.vmem [shape: s32[8], index: 0, kind: input, shape index: {}]
  %s1 = inlined_call_operand.vmem [shape: s32[8], index: 1, kind: input, shape index: {}]
  %s2 = inlined_call_operand.vmem [shape: f32[16,128], index: 2, kind: input, shape index: {}]
  %s3 = inlined_call_operand.vmem [shape: f32[24,128], index: 3, kind: input, shape index: {}]
  %s4 = inlined_call_operand.vmem [shape: bf16[256,64], index: 4, kind: input, shape index: {}]
  %s5 = inlined_call_operand.vmem [shape: f32[1,64], index: 5, kind: input, shape index: {}]
  %s6 = inlined_call_operand.vmem [shape: bf16[64,32], index: 6, kind: input, shape index: {}]
  %s7 = inlined_call_operand.vmem [shape: f32[1,32], index: 7, kind: input, shape index: {}]
  %s8 = inlined_call_operand.vmem [shape: f32[1,32], index: 8, kind: input, shape index: {}]
  %s9 = inlined_call_operand.<no memory space> [shape: f32[1,1], index: 9, kind: input, shape index: {}]
  %s10 = inlined_call_operand.vmem [shape: f32[128,1], index: 10, kind: output, shape index: {}]
  %s11 = sld [smem:[#allocation0]]
  $region108: #{net_forward.1} parent=0
    _
  %s13 = ssub.s32 1, %s11
  %s14 = scalar_select 0, %s13, %s11
  %s15 = sshll.u32 %s0, 4
  %s16 = int_to_ptr.vmem [resolvable:$true] %s15
  %18 = dma.vmem_to_smem %s16, 16, [#allocation5], [#allocation4]
  %s19 = sshll.u32 %s1, 4
  %s20 = int_to_ptr.vmem [resolvable:$true] %s19
  %22 = dma.vmem_to_smem %s20, 16, [#allocation6], [#allocation4]
  %v23 = vstv %s9
  %24 = vst [vmem:[#allocation7] sm:$0x1] %v23
  %25 = dma.done [#allocation4], 32
  %26 = sfence
  // Predicated region
  $region2: #{net_forward.1} parent=0 // pred_check
    _
  $region3: #{net_forward.1} parent=0 // pred_check_branch
    %28 = sbr.rel (0) target = $region5
  $region4: #{net_forward.1} parent=0 // pred_region
    _
  $region5: #{net_forward.1} parent=0 // pred_fallthru
    _
  // Predicated region
  $region6: #{net_forward.1} parent=0 // pred_check
    _
  $region7: #{net_forward.1} parent=0 // pred_check_branch
    %30 = sbr.rel (0) target = $region9
  $region8: #{net_forward.1} parent=0 // pred_region
    _
  $region9: #{net_forward.1} parent=0 // pred_fallthru
    _
  // Predicated region
  $region10: #{net_forward.1} parent=0 // pred_check
    _
  $region11: #{net_forward.1} parent=0 // pred_check_branch
    %32 = sbr.rel (0) target = $region13
  $region12: #{net_forward.1} parent=0 // pred_region
    _
  $region13: #{net_forward.1} parent=0 // pred_fallthru
    _
  // Predicated region
  $region14: #{net_forward.1} parent=0 // pred_check
    _
  $region15: #{net_forward.1} parent=0 // pred_check_branch
    %34 = sbr.rel (0) target = $region17
  $region16: #{net_forward.1} parent=0 // pred_region
    _
  $region17: #{net_forward.1} parent=0 // pred_fallthru
    _
  // Predicated region
  $region18: #{net_forward.1} parent=0 // pred_check
    _
  $region19: #{net_forward.1} parent=0 // pred_check_branch
    %36 = sbr.rel (0) target = $region21
  $region20: #{net_forward.1} parent=0 // pred_region
    _
  $region21: #{net_forward.1} parent=0 // pred_fallthru
    _
  // Predicated region
  $region22: #{net_forward.1} parent=0 // pred_check
    _
  $region23: #{net_forward.1} parent=0 // pred_check_branch
    %38 = sbr.rel (0) target = $region25
  $region24: #{net_forward.1} parent=0 // pred_region
    _
  $region25: #{net_forward.1} parent=0 // pred_fallthru
    _
  %s40 = smul.u32 0, 128
  loop: start=0, step=1, limit=128
  $region26: #{net_forward.1} parent=0 // loop_pre_header
    _
  $region27: #{net_forward.1} parent=0 // loop_header
    %s42 = sphi 0, %s46
    %p43 = scmp.ge.s32.totalorder %s42, 128
  $region28: #{net_forward.1} parent=0 // loop_header_branch
    %45 = sbr.rel (%p43) target = $region32
  $region29: #{net_forward.1} parent=0 // loop_body
    %s47 = sadd.s32 %s40, %s42
    %p48 = scmp.lt.s32.totalorder %s47, 7
    %s49 = scalar_select %p48, %s47, 7
    %s50 = sld [smem:[#allocation5 + %s49]]
    %s51 = sld [smem:[#allocation6 + %s49]]
    %s52 = scalar_lea.vmem %s2, %s50
    %s53 = sshrl.u32 %s42, 3
    %s54 = sand.u32 %s42, 7
    %s55 = smul.u32 %s53, 16
    %s56 = sadd.s32 %s54, %s55
    %s57 = scalar_lea.vmem [#allocation2], %s56
    %p59 = scmp.lt.u32.totalorder 1, 8
    %p60 = pneg %p59
    // Predicated region
    $region33: #{net_forward.1} parent=29 // pred_check
      _
    $region34: #{net_forward.1} parent=29 // pred_check_branch
      %62 = sbr.rel (%p59) target = $region36
    $region35: #{net_forward.1} parent=29 // pred_region
      %s78 = sand.u32 1, 7
      %p79 = scmp.eq.s32.totalorder %s78, 0
      %p80 = pneg %p79
      // Predicated region
      $region48: #{net_forward.1} parent=35 // pred_check
        _
      $region49: #{net_forward.1} parent=35 // pred_check_branch
        %82 = sbr.rel (%p79) target = $region51
      $region50: #{net_forward.1} parent=35 // pred_region
        %s83 = sand.u32 1, 7
        %s84 = ssub.s32 1, %s83
        %s85 = scalar_lea.vmem %s52, %s84
        %s86 = ssub.s32 1, %s83
        %s87 = scalar_lea.vmem %s57, %s86 [#allocation2]
        %s88 = sshll.u32 1, %s83
        %s89 = ssub.s32 %s88, 1
        loop: start=0, step=1, limit=1
        $region52: #{net_forward.1} parent=50 // loop_pre_header
          _
        $region53: #{net_forward.1} parent=50 // loop_header
          %s91 = sphi 0, %s95
          %p92 = scmp.ge.s32.totalorder %s91, 1
          %s96 = sphi %s85, %s85
          %s97 = sphi %s87, %s87
        $region54: #{net_forward.1} parent=50 // loop_header_branch
          %94 = sbr.rel (%p92) target = $region58
        $region55: #{net_forward.1} parent=50 // loop_body
          %v98 = vld [vmem:[%s96] sm:%s89]
          %99 = vst [vmem:[%s97] sm:%s89] %v98
        $region56: #{net_forward.1} parent=50 // loop_footer
          %s95 = sadd.s32 1, %s91
        $region57: #{net_forward.1} parent=50 // loop_footer_branch
          %90 = sbr.rel target = $region53
        $region58: #{net_forward.1} parent=50 // loop_exit
          _
      $region51: #{net_forward.1} parent=35 // pred_fallthru
        _
    $region36: #{net_forward.1} parent=29 // pred_fallthru
      _
    // Predicated region
    $region37: #{net_forward.1} parent=29 // pred_check
      %p63 = pneg %p59
    $region38: #{net_forward.1} parent=29 // pred_check_branch
      %65 = sbr.rel (%p63) target = $region40
    $region39: #{net_forward.1} parent=29 // pred_region
      %s66 = sshll.u32 1, 1
      %s67 = ssub.s32 %s66, 1
      loop: start=0, step=1, limit=1
      $region41: #{net_forward.1} parent=39 // loop_pre_header
        _
      $region42: #{net_forward.1} parent=39 // loop_header
        %s69 = sphi 0, %s73
        %p70 = scmp.ge.s32.totalorder %s69, 1
        %s74 = sphi %s52, %s52
        %s75 = sphi %s57, %s57
      $region43: #{net_forward.1} parent=39 // loop_header_branch
        %72 = sbr.rel (%p70) target = $region47
      $region44: #{net_forward.1} parent=39 // loop_body
        %v76 = vld [vmem:[%s74] sm:%s67]
        %77 = vst [vmem:[%s75] sm:%s67] %v76
      $region45: #{net_forward.1} parent=39 // loop_footer
        %s73 = sadd.s32 1, %s69
      $region46: #{net_forward.1} parent=39 // loop_footer_branch
        %68 = sbr.rel target = $region42
      $region47: #{net_forward.1} parent=39 // loop_exit
        _
    $region40: #{net_forward.1} parent=29 // pred_fallthru
      _
    // Predicated region
    $region59: #{net_forward.1} parent=29 // pred_check
      _
    $region60: #{net_forward.1} parent=29 // pred_check_branch
      %102 = sbr.rel (0) target = $region62
    $region61: #{net_forward.1} parent=29 // pred_region
      %103 = vsyncadd [#allocation3], 16
    $region62: #{net_forward.1} parent=29 // pred_fallthru
      _
    %s104 = scalar_lea.vmem %s3, %s51
    %s105 = sadd.s32 8, %s56
    %s106 = scalar_lea.vmem [#allocation2], %s105
    %p108 = scmp.lt.u32.totalorder 1, 8
    %p109 = pneg %p108
    // Predicated region
    $region63: #{net_forward.1} parent=29 // pred_check
      _
    $region64: #{net_forward.1} parent=29 // pred_check_branch
      %111 = sbr.rel (%p108) target = $region66
    $region65: #{net_forward.1} parent=29 // pred_region
      %s127 = sand.u32 1, 7
      %p128 = scmp.eq.s32.totalorder %s127, 0
      %p129 = pneg %p128
      // Predicated region
      $region78: #{net_forward.1} parent=65 // pred_check
        _
      $region79: #{net_forward.1} parent=65 // pred_check_branch
        %131 = sbr.rel (%p128) target = $region81
      $region80: #{net_forward.1} parent=65 // pred_region
        %s132 = sand.u32 1, 7
        %s133 = ssub.s32 1, %s132
        %s134 = scalar_lea.vmem %s104, %s133
        %s135 = ssub.s32 1, %s132
        %s136 = scalar_lea.vmem %s106, %s135 [#allocation2]
        %s137 = sshll.u32 1, %s132
        %s138 = ssub.s32 %s137, 1
        loop: start=0, step=1, limit=1
        $region82: #{net_forward.1} parent=80 // loop_pre_header
          _
        $region83: #{net_forward.1} parent=80 // loop_header
          %s140 = sphi 0, %s144
          %p141 = scmp.ge.s32.totalorder %s140, 1
          %s145 = sphi %s134, %s134
          %s146 = sphi %s136, %s136
        $region84: #{net_forward.1} parent=80 // loop_header_branch
          %143 = sbr.rel (%p141) target = $region88
        $region85: #{net_forward.1} parent=80 // loop_body
          %v147 = vld [vmem:[%s145] sm:%s138]
          %148 = vst [vmem:[%s146] sm:%s138] %v147
        $region86: #{net_forward.1} parent=80 // loop_footer
          %s144 = sadd.s32 1, %s140
        $region87: #{net_forward.1} parent=80 // loop_footer_branch
          %139 = sbr.rel target = $region83
        $region88: #{net_forward.1} parent=80 // loop_exit
          _
      $region81: #{net_forward.1} parent=65 // pred_fallthru
        _
    $region66: #{net_forward.1} parent=29 // pred_fallthru
      _
    // Predicated region
    $region67: #{net_forward.1} parent=29 // pred_check
      %p112 = pneg %p108
    $region68: #{net_forward.1} parent=29 // pred_check_branch
      %114 = sbr.rel (%p112) target = $region70
    $region69: #{net_forward.1} parent=29 // pred_region
      %s115 = sshll.u32 1, 1
      %s116 = ssub.s32 %s115, 1
      loop: start=0, step=1, limit=1
      $region71: #{net_forward.1} parent=69 // loop_pre_header
        _
      $region72: #{net_forward.1} parent=69 // loop_header
        %s118 = sphi 0, %s122
        %p119 = scmp.ge.s32.totalorder %s118, 1
        %s123 = sphi %s104, %s104
        %s124 = sphi %s106, %s106
      $region73: #{net_forward.1} parent=69 // loop_header_branch
        %121 = sbr.rel (%p119) target = $region77
      $region74: #{net_forward.1} parent=69 // loop_body
        %v125 = vld [vmem:[%s123] sm:%s116]
        %126 = vst [vmem:[%s124] sm:%s116] %v125
      $region75: #{net_forward.1} parent=69 // loop_footer
        %s122 = sadd.s32 1, %s118
      $region76: #{net_forward.1} parent=69 // loop_footer_branch
        %117 = sbr.rel target = $region72
      $region77: #{net_forward.1} parent=69 // loop_exit
        _
    $region70: #{net_forward.1} parent=29 // pred_fallthru
      _
    // Predicated region
    $region89: #{net_forward.1} parent=29 // pred_check
      _
    $region90: #{net_forward.1} parent=29 // pred_check_branch
      %151 = sbr.rel (0) target = $region92
    $region91: #{net_forward.1} parent=29 // pred_region
      %152 = vsyncadd [#allocation3], 16
    $region92: #{net_forward.1} parent=29 // pred_fallthru
      _
  $region30: #{net_forward.1} parent=0 // loop_footer
    %s46 = sadd.s32 1, %s42
  $region31: #{net_forward.1} parent=0 // loop_footer_branch
    %41 = sbr.rel target = $region27
  $region32: #{net_forward.1} parent=0 // loop_exit
    _
  loop: start=0, step=1, limit=128
  $region93: #{net_forward.1} parent=0 // loop_pre_header
    _
  $region94: #{net_forward.1} parent=0 // loop_header
    %s154 = sphi 0, %s158
    %p155 = scmp.ge.s32.totalorder %s154, 128
  $region95: #{net_forward.1} parent=0 // loop_header_branch
    %157 = sbr.rel (%p155) target = $region99
  $region96: #{net_forward.1} parent=0 // loop_body
    %s159 = sadd.s32 %s40, %s154
    %p160 = scmp.lt.s32.totalorder %s159, 7
    %s161 = scalar_select %p160, %s159, 7
    %s162 = sld [smem:[#allocation5 + %s161]]
    %s163 = sld [smem:[#allocation6 + %s161]]
    %165 = dma.done [#allocation3], 16
    %167 = dma.done [#allocation3], 16
  $region97: #{net_forward.1} parent=0 // loop_footer
    %s158 = sadd.s32 1, %s154
  $region98: #{net_forward.1} parent=0 // loop_footer_branch
    %153 = sbr.rel target = $region94
  $region99: #{net_forward.1} parent=0 // loop_exit
    _
  %v168 = vld [vmem:[#allocation2] sm:$0xff]
  %v169 = vld [vmem:[#allocation2 + $0x8] sm:$0xff]
  %v170 = vld [vmem:[#allocation2 + $0x10] sm:$0xff]
  %v171 = vld [vmem:[#allocation2 + $0x18] sm:$0xff]
  %v172 = vld [vmem:[#allocation2 + $0x20] sm:$0xff]
  %v173 = vld [vmem:[#allocation2 + $0x28] sm:$0xff]
  %v174 = vld [vmem:[#allocation2 + $0x30] sm:$0xff]
  %v175 = vld [vmem:[#allocation2 + $0x38] sm:$0xff]
  %v176 = vld [vmem:[#allocation2 + $0x40] sm:$0xff]
  %v177 = vld [vmem:[#allocation2 + $0x48] sm:$0xff]
  %v178 = vld [vmem:[#allocation2 + $0x50] sm:$0xff]
  %v179 = vld [vmem:[#allocation2 + $0x58] sm:$0xff]
  %v180 = vld [vmem:[#allocation2 + $0x60] sm:$0xff]
  %v181 = vld [vmem:[#allocation2 + $0x68] sm:$0xff]
  %v182 = vld [vmem:[#allocation2 + $0x70] sm:$0xff]
  %v183 = vld [vmem:[#allocation2 + $0x78] sm:$0xff]
  %v184 = vld [vmem:[#allocation2 + $0x80] sm:$0xff]
  %v185 = vld [vmem:[#allocation2 + $0x88] sm:$0xff]
  %v186 = vld [vmem:[#allocation2 + $0x90] sm:$0xff]
  %v187 = vld [vmem:[#allocation2 + $0x98] sm:$0xff]
  %v188 = vld [vmem:[#allocation2 + $0xa0] sm:$0xff]
  %v189 = vld [vmem:[#allocation2 + $0xa8] sm:$0xff]
  %v190 = vld [vmem:[#allocation2 + $0xb0] sm:$0xff]
  %v191 = vld [vmem:[#allocation2 + $0xb8] sm:$0xff]
  %v192 = vld [vmem:[#allocation2 + $0xc0] sm:$0xff]
  %v193 = vld [vmem:[#allocation2 + $0xc8] sm:$0xff]
  %v194 = vld [vmem:[#allocation2 + $0xd0] sm:$0xff]
  %v195 = vld [vmem:[#allocation2 + $0xd8] sm:$0xff]
  %v196 = vld [vmem:[#allocation2 + $0xe0] sm:$0xff]
  %v197 = vld [vmem:[#allocation2 + $0xe8] sm:$0xff]
  %v198 = vld [vmem:[#allocation2 + $0xf0] sm:$0xff]
  %v199 = vld [vmem:[#allocation2 + $0xf8] sm:$0xff]
  %v200 = vpack.c.bf16 %v170, %v168
  %v201 = vpack.c.bf16 %v171, %v169
  %v202 = vpack.c.bf16 %v174, %v172
  %v203 = vpack.c.bf16 %v175, %v173
  %v204 = vpack.c.bf16 %v178, %v176
  %v205 = vpack.c.bf16 %v179, %v177
  %v206 = vpack.c.bf16 %v182, %v180
  %v207 = vpack.c.bf16 %v183, %v181
  %v208 = vpack.c.bf16 %v186, %v184
  %v209 = vpack.c.bf16 %v187, %v185
  %v210 = vpack.c.bf16 %v190, %v188
  %v211 = vpack.c.bf16 %v191, %v189
  %v212 = vpack.c.bf16 %v194, %v192
  %v213 = vpack.c.bf16 %v195, %v193
  %v214 = vpack.c.bf16 %v198, %v196
  %v215 = vpack.c.bf16 %v199, %v197
  %v216 = vld [vmem:[%s4] sm:$0xf]
  %v217 = vld [vmem:[%s4 + $0x4] sm:$0xf]
  %v218 = vld [vmem:[%s4 + $0x8] sm:$0xf]
  %v219 = vld [vmem:[%s4 + $0xc] sm:$0xf]
  %v220 = vld [vmem:[%s4 + $0x10] sm:$0xf]
  %v221 = vld [vmem:[%s4 + $0x14] sm:$0xf]
  %v222 = vld [vmem:[%s4 + $0x18] sm:$0xf]
  %v223 = vld [vmem:[%s4 + $0x1c] sm:$0xf]
  %v224 = vld [vmem:[%s4 + $0x20] sm:$0xf]
  %v225 = vld [vmem:[%s4 + $0x24] sm:$0xf]
  %v226 = vld [vmem:[%s4 + $0x28] sm:$0xf]
  %v227 = vld [vmem:[%s4 + $0x2c] sm:$0xf]
  %v228 = vld [vmem:[%s4 + $0x30] sm:$0xf]
  %v229 = vld [vmem:[%s4 + $0x34] sm:$0xf]
  %v230 = vld [vmem:[%s4 + $0x38] sm:$0xf]
  %v231 = vld [vmem:[%s4 + $0x3c] sm:$0xf]
  %v232 = vld [vmem:[%s4 + $0x40] sm:$0xf]
  %v233 = vld [vmem:[%s4 + $0x44] sm:$0xf]
  %v234 = vld [vmem:[%s4 + $0x48] sm:$0xf]
  %v235 = vld [vmem:[%s4 + $0x4c] sm:$0xf]
  %v236 = vld [vmem:[%s4 + $0x50] sm:$0xf]
  %v237 = vld [vmem:[%s4 + $0x54] sm:$0xf]
  %v238 = vld [vmem:[%s4 + $0x58] sm:$0xf]
  %v239 = vld [vmem:[%s4 + $0x5c] sm:$0xf]
  %v240 = vld [vmem:[%s4 + $0x60] sm:$0xf]
  %v241 = vld [vmem:[%s4 + $0x64] sm:$0xf]
  %v242 = vld [vmem:[%s4 + $0x68] sm:$0xf]
  %v243 = vld [vmem:[%s4 + $0x6c] sm:$0xf]
  %v244 = vld [vmem:[%s4 + $0x70] sm:$0xf]
  %v245 = vld [vmem:[%s4 + $0x74] sm:$0xf]
  %v246 = vld [vmem:[%s4 + $0x78] sm:$0xf]
  %v247 = vld [vmem:[%s4 + $0x7c] sm:$0xf]
  %v248 = vld [vmem:[%s5] sm:$0x1]
  %v250 = vlaneseq
  %v251 = vshrl.u32 %v250, 7
  %v252 = vsub.s32 0, %v251
  %v253 = vrot.slane %v248, %v252
  %v287 = vunpack.c.l.b16 %v216
  %v288 = vunpack.c.l.b16 %v217
  %v289 = vunpack.c.l.b16 %v218
  %v290 = vunpack.c.l.b16 %v219
  %v291 = vunpack.c.l.b16 %v220
  %v292 = vunpack.c.l.b16 %v221
  %v293 = vunpack.c.l.b16 %v222
  %v294 = vunpack.c.l.b16 %v223
  %v295 = vunpack.c.l.b16 %v224
  %v296 = vunpack.c.l.b16 %v225
  %v297 = vunpack.c.l.b16 %v226
  %v298 = vunpack.c.l.b16 %v227
  %v299 = vunpack.c.l.b16 %v228
  %v300 = vunpack.c.l.b16 %v229
  %v301 = vunpack.c.l.b16 %v230
  %v302 = vunpack.c.l.b16 %v231
  %v303 = vunpack.c.l.b16 %v232
  %v304 = vunpack.c.l.b16 %v233
  %v305 = vunpack.c.l.b16 %v234
  %v306 = vunpack.c.l.b16 %v235
  %v307 = vunpack.c.l.b16 %v236
  %v308 = vunpack.c.l.b16 %v237
  %v309 = vunpack.c.l.b16 %v238
  %v310 = vunpack.c.l.b16 %v239
  %v311 = vunpack.c.l.b16 %v240
  %v312 = vunpack.c.l.b16 %v241
  %v313 = vunpack.c.l.b16 %v242
  %v314 = vunpack.c.l.b16 %v243
  %v315 = vunpack.c.l.b16 %v244
  %v316 = vunpack.c.l.b16 %v245
  %v317 = vunpack.c.l.b16 %v246
  %v318 = vunpack.c.l.b16 %v247
  %v319 = vpack.c.b16 %v288, %v287
  %v320 = vpack.c.b16 %v290, %v289
  %v321 = vpack.c.b16 %v292, %v291
  %v322 = vpack.c.b16 %v294, %v293
  %v323 = vpack.c.b16 %v296, %v295
  %v324 = vpack.c.b16 %v298, %v297
  %v325 = vpack.c.b16 %v300, %v299
  %v326 = vpack.c.b16 %v302, %v301
  %v327 = vpack.c.b16 %v304, %v303
  %v328 = vpack.c.b16 %v306, %v305
  %v329 = vpack.c.b16 %v308, %v307
  %v330 = vpack.c.b16 %v310, %v309
  %v331 = vpack.c.b16 %v312, %v311
  %v332 = vpack.c.b16 %v314, %v313
  %v333 = vpack.c.b16 %v316, %v315
  %v334 = vpack.c.b16 %v318, %v317
  %351 = vmatprep.subr.bf16.mxu0 0
  %352 = vmatpush1.bf16.msra.mxu0 %v326
  %353 = vmatprep.subr.bf16.mxu0 0
  %354 = vmatpush1.bf16.msra.mxu0 %v325
  %355 = vmatprep.subr.bf16.mxu0 0
  %356 = vmatpush1.bf16.msra.mxu0 %v324
  %357 = vmatprep.subr.bf16.mxu0 0
  %358 = vmatpush1.bf16.msra.mxu0 %v323
  %359 = vmatprep.subr.bf16.mxu0 0
  %360 = vmatpush1.bf16.msra.mxu0 %v322
  %361 = vmatprep.subr.bf16.mxu0 0
  %362 = vmatpush1.bf16.msra.mxu0 %v321
  %363 = vmatprep.subr.bf16.mxu0 0
  %364 = vmatpush1.bf16.msra.mxu0 %v320
  %365 = vmatprep.subr.bf16.mxu0 0
  %366 = vmatpush1.bf16.msra.mxu0 %v319
  %367 = vmatprep.subr.bf16.mxu0 0
  %368 = vmatpush2.bf16.msra.mxu0 %v334
  %369 = vmatprep.subr.bf16.mxu0 0
  %370 = vmatpush2.bf16.msra.mxu0 %v333
  %371 = vmatprep.subr.bf16.mxu0 0
  %372 = vmatpush2.bf16.msra.mxu0 %v332
  %373 = vmatprep.subr.bf16.mxu0 0
  %374 = vmatpush2.bf16.msra.mxu0 %v331
  %375 = vmatprep.subr.bf16.mxu0 0
  %376 = vmatpush2.bf16.msra.mxu0 %v330
  %377 = vmatprep.subr.bf16.mxu0 0
  %378 = vmatpush2.bf16.msra.mxu0 %v329
  %379 = vmatprep.subr.bf16.mxu0 0
  %380 = vmatpush2.bf16.msra.mxu0 %v328
  %381 = vmatprep.subr.bf16.mxu0 0
  %382 = vmatpush2.bf16.msra.mxu0 %v327
  %383 = vmatprep.mubr.bf16.mxu0 %v201
  %384 = vmatmul.mubr.bf16.gmra.mxu0 %v200
  %v385 = vpop.f32.mrf.mxu0
  %v386 = vadd.f32 %v253, %v385
  %v387 = vpop.f32.mrf.mxu0
  %v388 = vpop.f32.mrf.mxu0
  %v389 = vadd.f32 %v253, %v388
  %v390 = vpop.f32.mrf.mxu0
  %391 = vmatprep.mubr.bf16.mxu0 %v203
  %392 = vmatmul.mubr.bf16.gmra.mxu0 %v202
  %v393 = vpop.f32.mrf.mxu0
  %v394 = vadd.f32 %v253, %v393
  %v395 = vpop.f32.mrf.mxu0
  %v396 = vpop.f32.mrf.mxu0
  %v397 = vadd.f32 %v253, %v396
  %v398 = vpop.f32.mrf.mxu0
  %399 = vmatprep.mubr.bf16.mxu0 %v205
  %400 = vmatmul.mubr.bf16.gmra.mxu0 %v204
  %v401 = vpop.f32.mrf.mxu0
  %v402 = vadd.f32 %v253, %v401
  %v403 = vpop.f32.mrf.mxu0
  %v404 = vpop.f32.mrf.mxu0
  %v405 = vadd.f32 %v253, %v404
  %v406 = vpop.f32.mrf.mxu0
  %407 = vmatprep.mubr.bf16.mxu0 %v207
  %408 = vmatmul.mubr.bf16.gmra.mxu0 %v206
  %v409 = vpop.f32.mrf.mxu0
  %v410 = vadd.f32 %v253, %v409
  %v411 = vpop.f32.mrf.mxu0
  %v412 = vpop.f32.mrf.mxu0
  %v413 = vadd.f32 %v253, %v412
  %v414 = vpop.f32.mrf.mxu0
  %415 = vmatprep.mubr.bf16.mxu0 %v209
  %416 = vmatmul.mubr.bf16.gmra.mxu0 %v208
  %v417 = vpop.f32.mrf.mxu0
  %v418 = vadd.f32 %v253, %v417
  %v419 = vpop.f32.mrf.mxu0
  %v420 = vpop.f32.mrf.mxu0
  %v421 = vadd.f32 %v253, %v420
  %v422 = vpop.f32.mrf.mxu0
  %423 = vmatprep.mubr.bf16.mxu0 %v211
  %424 = vmatmul.mubr.bf16.gmra.mxu0 %v210
  %v425 = vpop.f32.mrf.mxu0
  %v426 = vadd.f32 %v253, %v425
  %v427 = vpop.f32.mrf.mxu0
  %v428 = vpop.f32.mrf.mxu0
  %v429 = vadd.f32 %v253, %v428
  %v430 = vpop.f32.mrf.mxu0
  %431 = vmatprep.mubr.bf16.mxu0 %v213
  %432 = vmatmul.mubr.bf16.gmra.mxu0 %v212
  %v433 = vpop.f32.mrf.mxu0
  %v434 = vadd.f32 %v253, %v433
  %v435 = vpop.f32.mrf.mxu0
  %v436 = vpop.f32.mrf.mxu0
  %v437 = vadd.f32 %v253, %v436
  %v438 = vpop.f32.mrf.mxu0
  %439 = vmatprep.mubr.bf16.mxu0 %v215
  %440 = vmatmul.mubr.bf16.gmra.mxu0 %v214
  %v441 = vpop.f32.mrf.mxu0
  %v442 = vadd.f32 %v253, %v441
  %v443 = vpop.f32.mrf.mxu0
  %v444 = vpop.f32.mrf.mxu0
  %v445 = vadd.f32 %v253, %v444
  %v446 = vpop.f32.mrf.mxu0
  %447 = vdwg.mxu0
  %v448 = vmax.f32 %v386, 0.0
  %v449 = vmax.f32 %v389, 0.0
  %v450 = vmax.f32 %v394, 0.0
  %v451 = vmax.f32 %v397, 0.0
  %v452 = vmax.f32 %v402, 0.0
  %v453 = vmax.f32 %v405, 0.0
  %v454 = vmax.f32 %v410, 0.0
  %v455 = vmax.f32 %v413, 0.0
  %v456 = vmax.f32 %v418, 0.0
  %v457 = vmax.f32 %v421, 0.0
  %v458 = vmax.f32 %v426, 0.0
  %v459 = vmax.f32 %v429, 0.0
  %v460 = vmax.f32 %v434, 0.0
  %v461 = vmax.f32 %v437, 0.0
  %v462 = vmax.f32 %v442, 0.0
  %v463 = vmax.f32 %v445, 0.0
  %v464 = vpack.c.bf16 %v449, %v448
  %v465 = vpack.c.bf16 %v451, %v450
  %v466 = vpack.c.bf16 %v453, %v452
  %v467 = vpack.c.bf16 %v455, %v454
  %v468 = vpack.c.bf16 %v457, %v456
  %v469 = vpack.c.bf16 %v459, %v458
  %v470 = vpack.c.bf16 %v461, %v460
  %v471 = vpack.c.bf16 %v463, %v462
  %v472 = vld [vmem:[%s6] sm:$0xf]
  %v473 = vld [vmem:[%s6 + $0x4] sm:$0xf]
  %v474 = vld [vmem:[%s6 + $0x8] sm:$0xf]
  %v475 = vld [vmem:[%s6 + $0xc] sm:$0xf]
  %v476 = vld [vmem:[%s6 + $0x10] sm:$0xf]
  %v477 = vld [vmem:[%s6 + $0x14] sm:$0xf]
  %v478 = vld [vmem:[%s6 + $0x18] sm:$0xf]
  %v479 = vld [vmem:[%s6 + $0x1c] sm:$0xf]
  %v480 = vld [vmem:[%s7] sm:$0x1]
  %v482 = vlaneseq
  %v483 = vshrl.u32 %v482, 7
  %v484 = vsub.s32 0, %v483
  %v485 = vrot.slane %v480, %v484
  %v495 = vunpack.c.l.b16 %v472
  %v496 = vunpack.c.l.b16 %v473
  %v497 = vunpack.c.l.b16 %v474
  %v498 = vunpack.c.l.b16 %v475
  %v499 = vunpack.c.l.b16 %v476
  %v500 = vunpack.c.l.b16 %v477
  %v501 = vunpack.c.l.b16 %v478
  %v502 = vunpack.c.l.b16 %v479
  %v503 = vpack.c.b16 %v496, %v495
  %v504 = vpack.c.b16 %v498, %v497
  %v505 = vpack.c.b16 %v500, %v499
  %v506 = vpack.c.b16 %v502, %v501
  %vm511 = vcmask 523264
  %v513 = vsel %vm511, %v464, 0
  %v516 = vsel %vm511, %v465, 0
  %v519 = vsel %vm511, %v466, 0
  %v522 = vsel %vm511, %v467, 0
  %v525 = vsel %vm511, %v468, 0
  %v528 = vsel %vm511, %v469, 0
  %v531 = vsel %vm511, %v470, 0
  %v534 = vsel %vm511, %v471, 0
  %536 = vmatprep.subr.bf16.mxu0 0
  %537 = vmatpush1.bf16.msra.mxu0 0
  %538 = vmatprep.subr.bf16.mxu0 0
  %539 = vmatpush1.bf16.msra.mxu0 0
  %540 = vmatprep.subr.bf16.mxu0 0
  %541 = vmatpush1.bf16.msra.mxu0 0
  %542 = vmatprep.subr.bf16.mxu0 0
  %543 = vmatpush1.bf16.msra.mxu0 0
  %544 = vmatprep.subr.bf16.mxu0 0
  %545 = vmatpush1.bf16.msra.mxu0 %v506
  %546 = vmatprep.subr.bf16.mxu0 0
  %547 = vmatpush1.bf16.msra.mxu0 %v505
  %548 = vmatprep.subr.bf16.mxu0 0
  %549 = vmatpush1.bf16.msra.mxu0 %v504
  %550 = vmatprep.subr.bf16.mxu0 0
  %551 = vmatpush1.bf16.msra.mxu0 %v503
  %552 = vmatprep.subr.bf16.mxu0 0
  %553 = vmatpush2.bf16.msra.mxu0 0
  %554 = vmatprep.subr.bf16.mxu0 0
  %555 = vmatpush2.bf16.msra.mxu0 0
  %556 = vmatprep.subr.bf16.mxu0 0
  %557 = vmatpush2.bf16.msra.mxu0 0
  %558 = vmatprep.subr.bf16.mxu0 0
  %559 = vmatpush2.bf16.msra.mxu0 0
  %560 = vmatprep.subr.bf16.mxu0 0
  %561 = vmatpush2.bf16.msra.mxu0 0
  %562 = vmatprep.subr.bf16.mxu0 0
  %563 = vmatpush2.bf16.msra.mxu0 0
  %564 = vmatprep.subr.bf16.mxu0 0
  %565 = vmatpush2.bf16.msra.mxu0 0
  %566 = vmatprep.subr.bf16.mxu0 0
  %567 = vmatpush2.bf16.msra.mxu0 0
  %568 = vmatprep.mubr.bf16.mxu0 0
  %569 = vmatmul.mubr.bf16.gmra.mxu0 %v513
  %v570 = vpop.f32.mrf.mxu0
  %v571 = vadd.f32 %v485, %v570
  %v572 = vpop.f32.mrf.mxu0
  %v573 = vpop.f32.mrf.mxu0
  %v574 = vadd.f32 %v485, %v573
  %v575 = vpop.f32.mrf.mxu0
  %576 = vmatprep.mubr.bf16.mxu0 0
  %577 = vmatmul.mubr.bf16.gmra.mxu0 %v516
  %v578 = vpop.f32.mrf.mxu0
  %v579 = vadd.f32 %v485, %v578
  %v580 = vpop.f32.mrf.mxu0
  %v581 = vpop.f32.mrf.mxu0
  %v582 = vadd.f32 %v485, %v581
  %v583 = vpop.f32.mrf.mxu0
  %584 = vmatprep.mubr.bf16.mxu0 0
  %585 = vmatmul.mubr.bf16.gmra.mxu0 %v519
  %v586 = vpop.f32.mrf.mxu0
  %v587 = vadd.f32 %v485, %v586
  %v588 = vpop.f32.mrf.mxu0
  %v589 = vpop.f32.mrf.mxu0
  %v590 = vadd.f32 %v485, %v589
  %v591 = vpop.f32.mrf.mxu0
  %592 = vmatprep.mubr.bf16.mxu0 0
  %593 = vmatmul.mubr.bf16.gmra.mxu0 %v522
  %v594 = vpop.f32.mrf.mxu0
  %v595 = vadd.f32 %v485, %v594
  %v596 = vpop.f32.mrf.mxu0
  %v597 = vpop.f32.mrf.mxu0
  %v598 = vadd.f32 %v485, %v597
  %v599 = vpop.f32.mrf.mxu0
  %600 = vmatprep.mubr.bf16.mxu0 0
  %601 = vmatmul.mubr.bf16.gmra.mxu0 %v525
  %v602 = vpop.f32.mrf.mxu0
  %v603 = vadd.f32 %v485, %v602
  %v604 = vpop.f32.mrf.mxu0
  %v605 = vpop.f32.mrf.mxu0
  %v606 = vadd.f32 %v485, %v605
  %v607 = vpop.f32.mrf.mxu0
  %608 = vmatprep.mubr.bf16.mxu0 0
  %609 = vmatmul.mubr.bf16.gmra.mxu0 %v528
  %v610 = vpop.f32.mrf.mxu0
  %v611 = vadd.f32 %v485, %v610
  %v612 = vpop.f32.mrf.mxu0
  %v613 = vpop.f32.mrf.mxu0
  %v614 = vadd.f32 %v485, %v613
  %v615 = vpop.f32.mrf.mxu0
  %616 = vmatprep.mubr.bf16.mxu0 0
  %617 = vmatmul.mubr.bf16.gmra.mxu0 %v531
  %v618 = vpop.f32.mrf.mxu0
  %v619 = vadd.f32 %v485, %v618
  %v620 = vpop.f32.mrf.mxu0
  %v621 = vpop.f32.mrf.mxu0
  %v622 = vadd.f32 %v485, %v621
  %v623 = vpop.f32.mrf.mxu0
  %624 = vmatprep.mubr.bf16.mxu0 0
  %625 = vmatmul.mubr.bf16.gmra.mxu0 %v534
  %v626 = vpop.f32.mrf.mxu0
  %v627 = vadd.f32 %v485, %v626
  %v628 = vpop.f32.mrf.mxu0
  %v629 = vpop.f32.mrf.mxu0
  %v630 = vadd.f32 %v485, %v629
  %v631 = vpop.f32.mrf.mxu0
  %632 = vdwg.mxu0
  %v633 = vmax.f32 %v571, 0.0
  %v634 = vmax.f32 %v574, 0.0
  %v635 = vmax.f32 %v579, 0.0
  %v636 = vmax.f32 %v582, 0.0
  %v637 = vmax.f32 %v587, 0.0
  %v638 = vmax.f32 %v590, 0.0
  %v639 = vmax.f32 %v595, 0.0
  %v640 = vmax.f32 %v598, 0.0
  %v641 = vmax.f32 %v603, 0.0
  %v642 = vmax.f32 %v606, 0.0
  %v643 = vmax.f32 %v611, 0.0
  %v644 = vmax.f32 %v614, 0.0
  %v645 = vmax.f32 %v619, 0.0
  %v646 = vmax.f32 %v622, 0.0
  %v647 = vmax.f32 %v627, 0.0
  %v648 = vmax.f32 %v630, 0.0
  %v649 = vld [vmem:[%s8] sm:$0x1]
  %v651 = vlaneseq
  %v652 = vshrl.u32 %v651, 7
  %v653 = vsub.s32 0, %v652
  %v654 = vrot.slane %v649, %v653
  %v656 = vmul.f32 %v633, %v654
  %v657 = vmul.f32 %v634, %v654
  %v658 = vmul.f32 %v635, %v654
  %v659 = vmul.f32 %v636, %v654
  %v660 = vmul.f32 %v637, %v654
  %v661 = vmul.f32 %v638, %v654
  %v662 = vmul.f32 %v639, %v654
  %v663 = vmul.f32 %v640, %v654
  %v664 = vmul.f32 %v641, %v654
  %v665 = vmul.f32 %v642, %v654
  %v666 = vmul.f32 %v643, %v654
  %v667 = vmul.f32 %v644, %v654
  %v668 = vmul.f32 %v645, %v654
  %v669 = vmul.f32 %v646, %v654
  %v670 = vmul.f32 %v647, %v654
  %v671 = vmul.f32 %v648, %v654
  %vm672 = vcmask 261120
  %v673 = vsel %vm672, %v656, 0.0
  %674 = vadd.xlane.f32.xlu0 %v673
  %v675 = vpop.xlane.xlu0 %674
  %v676 = vsel %vm672, %v657, 0.0
  %677 = vadd.xlane.f32.xlu0 %v676
  %v678 = vpop.xlane.xlu0 %677
  %v679 = vsel %vm672, %v658, 0.0
  %680 = vadd.xlane.f32.xlu0 %v679
  %v681 = vpop.xlane.xlu0 %680
  %v682 = vsel %vm672, %v659, 0.0
  %683 = vadd.xlane.f32.xlu0 %v682
  %v684 = vpop.xlane.xlu0 %683
  %v685 = vsel %vm672, %v660, 0.0
  %686 = vadd.xlane.f32.xlu0 %v685
  %v687 = vpop.xlane.xlu0 %686
  %v688 = vsel %vm672, %v661, 0.0
  %689 = vadd.xlane.f32.xlu0 %v688
  %v690 = vpop.xlane.xlu0 %689
  %v691 = vsel %vm672, %v662, 0.0
  %692 = vadd.xlane.f32.xlu0 %v691
  %v693 = vpop.xlane.xlu0 %692
  %v694 = vsel %vm672, %v663, 0.0
  %695 = vadd.xlane.f32.xlu0 %v694
  %v696 = vpop.xlane.xlu0 %695
  %v697 = vsel %vm672, %v664, 0.0
  %698 = vadd.xlane.f32.xlu0 %v697
  %v699 = vpop.xlane.xlu0 %698
  %v700 = vsel %vm672, %v665, 0.0
  %701 = vadd.xlane.f32.xlu0 %v700
  %v702 = vpop.xlane.xlu0 %701
  %v703 = vsel %vm672, %v666, 0.0
  %704 = vadd.xlane.f32.xlu0 %v703
  %v705 = vpop.xlane.xlu0 %704
  %v706 = vsel %vm672, %v667, 0.0
  %707 = vadd.xlane.f32.xlu0 %v706
  %v708 = vpop.xlane.xlu0 %707
  %v709 = vsel %vm672, %v668, 0.0
  %710 = vadd.xlane.f32.xlu0 %v709
  %v711 = vpop.xlane.xlu0 %710
  %v712 = vsel %vm672, %v669, 0.0
  %713 = vadd.xlane.f32.xlu0 %v712
  %v714 = vpop.xlane.xlu0 %713
  %v715 = vsel %vm672, %v670, 0.0
  %716 = vadd.xlane.f32.xlu0 %v715
  %v717 = vpop.xlane.xlu0 %716
  %v718 = vsel %vm672, %v671, 0.0
  %719 = vadd.xlane.f32.xlu0 %v718
  %v720 = vpop.xlane.xlu0 %719
  %v721 = vld [vmem:[#allocation7] sm:$0x1]
  %v723 = vlaneseq
  %v724 = vshrl.u32 %v723, 7
  %v725 = vsub.s32 0, %v724
  %v726 = vrot.slane %v721, %v725
  %v728 = vadd.f32 %v675, %v726
  %v729 = vadd.f32 %v678, %v726
  %v730 = vadd.f32 %v681, %v726
  %v731 = vadd.f32 %v684, %v726
  %v732 = vadd.f32 %v687, %v726
  %v733 = vadd.f32 %v690, %v726
  %v734 = vadd.f32 %v693, %v726
  %v735 = vadd.f32 %v696, %v726
  %v736 = vadd.f32 %v699, %v726
  %v737 = vadd.f32 %v702, %v726
  %v738 = vadd.f32 %v705, %v726
  %v739 = vadd.f32 %v708, %v726
  %v740 = vadd.f32 %v711, %v726
  %v741 = vadd.f32 %v714, %v726
  %v742 = vadd.f32 %v717, %v726
  %v743 = vadd.f32 %v720, %v726
  %v744 = vsub.f32 0.0, %v728
  %v745 = vsub.f32 0.0, %v729
  %v746 = vsub.f32 0.0, %v730
  %v747 = vsub.f32 0.0, %v731
  %v748 = vsub.f32 0.0, %v732
  %v749 = vsub.f32 0.0, %v733
  %v750 = vsub.f32 0.0, %v734
  %v751 = vsub.f32 0.0, %v735
  %v752 = vsub.f32 0.0, %v736
  %v753 = vsub.f32 0.0, %v737
  %v754 = vsub.f32 0.0, %v738
  %v755 = vsub.f32 0.0, %v739
  %v756 = vsub.f32 0.0, %v740
  %v757 = vsub.f32 0.0, %v741
  %v758 = vsub.f32 0.0, %v742
  %v759 = vsub.f32 0.0, %v743
  %v760 = vmul.f32 %v744, 1.442695
  %v761 = vpow.pop %v760
  %v762 = vmul.f32 %v745, 1.442695
  %v763 = vpow.pop %v762
  %v764 = vmul.f32 %v746, 1.442695
  %v765 = vpow.pop %v764
  %v766 = vmul.f32 %v747, 1.442695
  %v767 = vpow.pop %v766
  %v768 = vmul.f32 %v748, 1.442695
  %v769 = vpow.pop %v768
  %v770 = vmul.f32 %v749, 1.442695
  %v771 = vpow.pop %v770
  %v772 = vmul.f32 %v750, 1.442695
  %v773 = vpow.pop %v772
  %v774 = vmul.f32 %v751, 1.442695
  %v775 = vpow.pop %v774
  %v776 = vmul.f32 %v752, 1.442695
  %v777 = vpow.pop %v776
  %v778 = vmul.f32 %v753, 1.442695
  %v779 = vpow.pop %v778
  %v780 = vmul.f32 %v754, 1.442695
  %v781 = vpow.pop %v780
  %v782 = vmul.f32 %v755, 1.442695
  %v783 = vpow.pop %v782
  %v784 = vmul.f32 %v756, 1.442695
  %v785 = vpow.pop %v784
  %v786 = vmul.f32 %v757, 1.442695
  %v787 = vpow.pop %v786
  %v788 = vmul.f32 %v758, 1.442695
  %v789 = vpow.pop %v788
  %v790 = vmul.f32 %v759, 1.442695
  %v791 = vpow.pop %v790
  %v792 = vadd.f32 %v761, 1.0
  %v793 = vadd.f32 %v763, 1.0
  %v794 = vadd.f32 %v765, 1.0
  %v795 = vadd.f32 %v767, 1.0
  %v796 = vadd.f32 %v769, 1.0
  %v797 = vadd.f32 %v771, 1.0
  %v798 = vadd.f32 %v773, 1.0
  %v799 = vadd.f32 %v775, 1.0
  %v800 = vadd.f32 %v777, 1.0
  %v801 = vadd.f32 %v779, 1.0
  %v802 = vadd.f32 %v781, 1.0
  %v803 = vadd.f32 %v783, 1.0
  %v804 = vadd.f32 %v785, 1.0
  %v805 = vadd.f32 %v787, 1.0
  %v806 = vadd.f32 %v789, 1.0
  %v807 = vadd.f32 %v791, 1.0
  %v808 = vrcp.pop %v792
  %v809 = vmul.f32 1.0, %v808
  %v810 = vrcp.pop %v793
  %v811 = vmul.f32 1.0, %v810
  %v812 = vrcp.pop %v794
  %v813 = vmul.f32 1.0, %v812
  %v814 = vrcp.pop %v795
  %v815 = vmul.f32 1.0, %v814
  %v816 = vrcp.pop %v796
  %v817 = vmul.f32 1.0, %v816
  %v818 = vrcp.pop %v797
  %v819 = vmul.f32 1.0, %v818
  %v820 = vrcp.pop %v798
  %v821 = vmul.f32 1.0, %v820
  %v822 = vrcp.pop %v799
  %v823 = vmul.f32 1.0, %v822
  %v824 = vrcp.pop %v800
  %v825 = vmul.f32 1.0, %v824
  %v826 = vrcp.pop %v801
  %v827 = vmul.f32 1.0, %v826
  %v828 = vrcp.pop %v802
  %v829 = vmul.f32 1.0, %v828
  %v830 = vrcp.pop %v803
  %v831 = vmul.f32 1.0, %v830
  %v832 = vrcp.pop %v804
  %v833 = vmul.f32 1.0, %v832
  %v834 = vrcp.pop %v805
  %v835 = vmul.f32 1.0, %v834
  %v836 = vrcp.pop %v806
  %v837 = vmul.f32 1.0, %v836
  %v838 = vrcp.pop %v807
  %v839 = vmul.f32 1.0, %v838
  %v840 = vmul.f32 %v809, 4.0
  %v841 = vmul.f32 %v811, 4.0
  %v842 = vmul.f32 %v813, 4.0
  %v843 = vmul.f32 %v815, 4.0
  %v844 = vmul.f32 %v817, 4.0
  %v845 = vmul.f32 %v819, 4.0
  %v846 = vmul.f32 %v821, 4.0
  %v847 = vmul.f32 %v823, 4.0
  %v848 = vmul.f32 %v825, 4.0
  %v849 = vmul.f32 %v827, 4.0
  %v850 = vmul.f32 %v829, 4.0
  %v851 = vmul.f32 %v831, 4.0
  %v852 = vmul.f32 %v833, 4.0
  %v853 = vmul.f32 %v835, 4.0
  %v854 = vmul.f32 %v837, 4.0
  %v855 = vmul.f32 %v839, 4.0
  %v856 = vadd.f32 %v840, 1.0
  %v857 = vadd.f32 %v841, 1.0
  %v858 = vadd.f32 %v842, 1.0
  %v859 = vadd.f32 %v843, 1.0
  %v860 = vadd.f32 %v844, 1.0
  %v861 = vadd.f32 %v845, 1.0
  %v862 = vadd.f32 %v846, 1.0
  %v863 = vadd.f32 %v847, 1.0
  %v864 = vadd.f32 %v848, 1.0
  %v865 = vadd.f32 %v849, 1.0
  %v866 = vadd.f32 %v850, 1.0
  %v867 = vadd.f32 %v851, 1.0
  %v868 = vadd.f32 %v852, 1.0
  %v869 = vadd.f32 %v853, 1.0
  %v870 = vadd.f32 %v854, 1.0
  %v871 = vadd.f32 %v855, 1.0
  %v872 = vmax.f32 %v856, 1.0
  %v873 = vmax.f32 %v857, 1.0
  %v874 = vmax.f32 %v858, 1.0
  %v875 = vmax.f32 %v859, 1.0
  %v876 = vmax.f32 %v860, 1.0
  %v877 = vmax.f32 %v861, 1.0
  %v878 = vmax.f32 %v862, 1.0
  %v879 = vmax.f32 %v863, 1.0
  %v880 = vmax.f32 %v864, 1.0
  %v881 = vmax.f32 %v865, 1.0
  %v882 = vmax.f32 %v866, 1.0
  %v883 = vmax.f32 %v867, 1.0
  %v884 = vmax.f32 %v868, 1.0
  %v885 = vmax.f32 %v869, 1.0
  %v886 = vmax.f32 %v870, 1.0
  %v887 = vmax.f32 %v871, 1.0
  %v888 = vmin.f32 %v872, 5.0
  %v889 = vmin.f32 %v873, 5.0
  %v890 = vmin.f32 %v874, 5.0
  %v891 = vmin.f32 %v875, 5.0
  %v892 = vmin.f32 %v876, 5.0
  %v893 = vmin.f32 %v877, 5.0
  %v894 = vmin.f32 %v878, 5.0
  %v895 = vmin.f32 %v879, 5.0
  %v896 = vmin.f32 %v880, 5.0
  %v897 = vmin.f32 %v881, 5.0
  %v898 = vmin.f32 %v882, 5.0
  %v899 = vmin.f32 %v883, 5.0
  %v900 = vmin.f32 %v884, 5.0
  %v901 = vmin.f32 %v885, 5.0
  %v902 = vmin.f32 %v886, 5.0
  %v903 = vmin.f32 %v887, 5.0
  %vm904 = vcmask 7168
  %905 = vst.msk [vmem:[%s10] sm:$0xff] %vm904, %v888
  %906 = vst.msk [vmem:[%s10 + $0x8] sm:$0xff] %vm904, %v889
  %907 = vst.msk [vmem:[%s10 + $0x10] sm:$0xff] %vm904, %v890
  %908 = vst.msk [vmem:[%s10 + $0x18] sm:$0xff] %vm904, %v891
  %909 = vst.msk [vmem:[%s10 + $0x20] sm:$0xff] %vm904, %v892
  %910 = vst.msk [vmem:[%s10 + $0x28] sm:$0xff] %vm904, %v893
  %911 = vst.msk [vmem:[%s10 + $0x30] sm:$0xff] %vm904, %v894
  %912 = vst.msk [vmem:[%s10 + $0x38] sm:$0xff] %vm904, %v895
  %913 = vst.msk [vmem:[%s10 + $0x40] sm:$0xff] %vm904, %v896
  %914 = vst.msk [vmem:[%s10 + $0x48] sm:$0xff] %vm904, %v897
  %915 = vst.msk [vmem:[%s10 + $0x50] sm:$0xff] %vm904, %v898
  %916 = vst.msk [vmem:[%s10 + $0x58] sm:$0xff] %vm904, %v899
  %917 = vst.msk [vmem:[%s10 + $0x60] sm:$0xff] %vm904, %v900
  %918 = vst.msk [vmem:[%s10 + $0x68] sm:$0xff] %vm904, %v901
  %919 = vst.msk [vmem:[%s10 + $0x70] sm:$0xff] %vm904, %v902
  %920 = vst.msk [vmem:[%s10 + $0x78] sm:$0xff] %vm904, %v903
  // Predicated region
  $region100: #{net_forward.1} parent=0 // pred_check
    _
  $region101: #{net_forward.1} parent=0 // pred_check_branch
    %922 = sbr.rel (0) target = $region103
  $region102: #{net_forward.1} parent=0 // pred_region
    _
  $region103: #{net_forward.1} parent=0 // pred_fallthru
    _
  // Predicated region
  $region104: #{net_forward.1} parent=0 // pred_check
    _
  $region105: #{net_forward.1} parent=0 // pred_check_branch
    %924 = sbr.rel (0) target = $region107
  $region106: #{net_forward.1} parent=0 // pred_region
    _
  $region107: #{net_forward.1} parent=0 // pred_fallthru
    _
  %925 = vsyncmov [#allocation3]
  %s926 = vpop.sfrf %925
  %p927 = scmp.eq.s32.totalorder %s926, 0
  %p928 = pneg %p927
  %930 = shalt.err (%p928)

</llo_original>
